<compile_context>
chip_gen: v5e
topology: v5e:2x2
jax: 0.10.0
libtpu: 0.0.40
codegen_flags: <defaults>
</compile_context>

<pallas_src>
import jax
import jax.numpy as jnp
import numpy as np
from jax.experimental import pallas as pl
from jax.experimental.pallas import tpu as pltpu


# ----------------------------------------------------------------------------
# Pallas kernel: in-kernel transpose -> lane-dense sincos -> split complex
# matmul (2 real MXU dots) -> |amp|^2 -> W^T matmul + bias, lane-dense store.
# ----------------------------------------------------------------------------
def quantum_layer_kernel(
    x_ref,      # [TB, M]   raw features, batch-major (as the module sees them)
    ac_ref,     # [2M, M]   [[Re D], [Im D]]
    as_ref,     # [2M, M]   [[-Im D], [Re D]]
    wt_ref,     # [O, M]    output-mapping weight, transposed (W^T)
    b_ref,      # [O, 1]    output-mapping bias
    out_ref,    # [O, TB]   lane-dense output slab (batch on the 128-lane axis)
):
    m = ac_ref.shape[1]

    # One XLU transpose per tile so every downstream op is lane-dense
    # (batch on the 128-lane axis). This replaces a full wrapper-side HBM
    # transpose pass over x.
    xt = x_ref[...].T                                              # [M, TB]

    # _prepare_input_encoding (custom-circuit mode): encoded phases = x * pi.
    # Trig kept in f32: v5e has no bf16 EUP and the 1e-4 check must hold.
    phi = xt * jnp.pi
    c = jnp.cos(phi)                                               # [M, TB]
    s = jnp.sin(phi)                                               # [M, TB]

    # Complex product D @ exp(i*phi) as two real MXU dots accumulating into one
    # [2M, TB] f32 result: rows [:M] = Re(amp), rows [M:] = Im(amp).
    dt = ac_ref.dtype
    v = (jnp.dot(ac_ref[...], c.astype(dt), preferred_element_type=jnp.float32)
         + jnp.dot(as_ref[...], s.astype(dt), preferred_element_type=jnp.float32))

    # Photon-count distribution (single photon, no bunching): |amplitude|^2.
    # Cheap VPU add; rides in a free VALU slot.
    dist = v[:m] * v[:m] + v[m:] * v[m:]                           # [M, TB]

    # Output mapping: LINEAR -> lane-dense [O, TB] store.
    out_ref[...] = (
        jnp.dot(wt_ref[...], dist.astype(wt_ref.dtype),
                preferred_element_type=jnp.float32)
        + b_ref[...]
    ).astype(out_ref.dtype)


# ----------------------------------------------------------------------------
# Wrapper: fold static circuit algebra once, 128-aligned batch tiles, call.
# ----------------------------------------------------------------------------
def quantum_layer_forward(x, theta1, theta2, U1, U2, U3, W, bias,
                          *, tile_b=None, use_bf16_mxu=False):
    B, M = x.shape
    O = W.shape[1]

    # ---- Fold all static circuit algebra (plain JAX, once per forward) ------
    # v1 = U1 @ (exp(i*theta1) * e_0) = U1[:, 0] * exp(i*theta1[0])
    v1 = U1[:, 0] * jnp.exp(1j * theta1[0].astype(jnp.complex64))        # [M]
    # Umid = U3 @ diag(exp(i*theta2)) @ U2
    Umid = U3 @ (jnp.exp(1j * theta2.astype(jnp.complex64))[:, None] * U2)
    # amp = D @ exp(i*phi)  with  D = Umid @ diag(v1)
    D = Umid * v1[None, :]                                               # [M, M]
    Dr = jnp.real(D).astype(jnp.float32)
    Di = jnp.imag(D).astype(jnp.float32)
    # Split-complex operands (no in-kernel sublane concat of cos/sin needed):
    Ac = jnp.concatenate([Dr, Di], axis=0)                               # [2M, M]
    As = jnp.concatenate([-Di, Dr], axis=0)                              # [2M, M]
    Wt = jnp.asarray(W, jnp.float32).T                                   # [O, M]
    b2 = jnp.asarray(bias, jnp.float32).reshape(O, 1)                    # [O, 1]
    if use_bf16_mxu:
        # bf16-native MXU on all generations; breaks 1e-4 tolerance (see TODO).
        Ac = Ac.astype(jnp.bfloat16)
        As = As.astype(jnp.bfloat16)
        Wt = Wt.astype(jnp.bfloat16)

    # ---- Batch tiling: large, always 128-aligned tiles (lane-dense stores) --
    if tile_b is None:
        tile_b = min(B, 4096)                     # per-tile VMEM << 64 MiB (v7x)
    tile_b = max(128, ((tile_b + 127) // 128) * 128)
    B_pad = ((B + tile_b - 1) // tile_b) * tile_b
    xp = jnp.asarray(x, jnp.float32)
    if B_pad != B:
        xp = jnp.pad(xp, ((0, B_pad - B), (0, 0)))   # padded rows sliced off below
    grid = (B_pad // tile_b,)

    # ---- Constant-operand specs: single-buffer them when they get large -----
    itemsize = 2 if use_bf16_mxu else 4
    const_bytes = (2 * Ac.size + Wt.size) * itemsize
    if const_bytes > (4 << 20):
        def const_spec(shape):
            return pl.BlockSpec(shape, lambda i: (0, 0),
                                pipeline_mode=pl.Buffered(1))
        # explicit VMEM budget for large n_modes (v7x: 64 MiB physical)
        vmem_limit = min(const_bytes + (16 << 20), 60 << 20)
    else:
        def const_spec(shape):
            return pl.BlockSpec(shape, lambda i: (0, 0))
        vmem_limit = None

    # ---- Grid-axis semantics: CORE_PARALLEL on v7x (2 TCs), parallel else ---
    dim_sem = ("parallel",)
    try:
        if "v7" in jax.devices()[0].device_kind.lower() and grid[0] >= 2:
            dim_sem = (pltpu.CORE_PARALLEL,)
    except Exception:
        pass

    cp_kwargs = dict(dimension_semantics=dim_sem)
    if vmem_limit is not None:
        cp_kwargs["vmem_limit_bytes"] = vmem_limit

    out_t = pl.pallas_call(
        quantum_layer_kernel,
        out_shape=jax.ShapeDtypeStruct((O, B_pad), jnp.float32),
        grid=grid,
        in_specs=[
            pl.BlockSpec((tile_b, M), lambda i: (i, 0)),   # x batch tile
            const_spec((2 * M, M)),                        # Ac
            const_spec((2 * M, M)),                        # As
            const_spec((O, M)),                            # W^T
            const_spec((O, 1)),                            # bias
        ],
        out_specs=pl.BlockSpec((O, tile_b), lambda i: (0, i)),
        compiler_params=pltpu.CompilerParams(**cp_kwargs),
    )(xp, Ac, As, Wt, b2)

    # Small [O, B] -> [B, O] transpose to preserve the module's output layout.
    return out_t[:, :B].T


# ----------------------------------------------------------------------------
# Pure-JAX reference (complex arithmetic) for correctness check
# ----------------------------------------------------------------------------
def quantum_layer_reference(x, theta1, theta2, U1, U2, U3, W, bias):
    M = U1.shape[0]
    e0 = jnp.zeros((M,), jnp.complex64).at[0].set(1.0 + 0.0j)
    v1 = U1 @ (jnp.exp(1j * theta1.astype(jnp.complex64)) * e0)       # [M]
    phi = x * jnp.pi
    a = jnp.exp(1j * phi.astype(jnp.complex64)) * v1[None, :]         # [B, M]
    v2 = a @ U2.T                                                     # [B, M]
    b = jnp.exp(1j * theta2.astype(jnp.complex64))[None, :] * v2
    v3 = b @ U3.T
    dist = jnp.abs(v3) ** 2                                           # [B, M]
    return dist @ W + bias[None, :]


def dft_unitary(m):
    j = np.arange(m)
    U = np.exp(2j * np.pi * np.outer(j, j) / m) / np.sqrt(m)
    return jnp.asarray(U, jnp.complex64)


if __name__ == "__main__":
    # Small shapes consistent with the module: input_size == n_modes == 8,
    # batch 16, output_size 4 (LINEAR output mapping from dist_size=8 -> 4).
    B, M, O = 16, 8, 4

    key = jax.random.PRNGKey(0)
    k_x, k_t1, k_t2, k_w, k_b = jax.random.split(key, 5)

    x = jax.random.uniform(k_x, (B, M), jnp.float32)                 # features in [0,1]
    # trainable thetas: randn * pi (matches _setup_parameters_from_*)
    theta1 = jax.random.normal(k_t1, (M,), jnp.float32) * jnp.pi
    theta2 = jax.random.normal(k_t2, (M,), jnp.float32) * jnp.pi
    # LINEAR output mapping (nn.Linear-style init), stored as [dist_size, out]
    kw = 1.0 / np.sqrt(M)
    W = jax.random.uniform(k_w, (M, O), jnp.float32, -kw, kw)
    bias = jax.random.uniform(k_b, (O,), jnp.float32, -kw, kw)

    U1, U2, U3 = dft_unitary(M), dft_unitary(M), dft_unitary(M)

    fwd = jax.jit(quantum_layer_forward)
    y = fwd(x, theta1, theta2, U1, U2, U3, W, bias)
    y = jax.block_until_ready(y)

    y_ref = quantum_layer_reference(x, theta1, theta2, U1, U2, U3, W, bias)
    np.testing.assert_allclose(np.asarray(y), np.asarray(y_ref), rtol=1e-4, atol=1e-4)

    print("KERNEL_OK")
</pallas_src>

<mosaic_0001>
module attributes {stable_mosaic.version = 11 : i64} {
  func.func @quantum_layer_kernel(%arg0: i32, %arg1: memref<128x8xf32, #tpu.memory_space<vmem>>, %arg2: memref<16x8xf32, #tpu.memory_space<vmem>>, %arg3: memref<16x8xf32, #tpu.memory_space<vmem>>, %arg4: memref<4x8xf32, #tpu.memory_space<vmem>>, %arg5: memref<4x1xf32, #tpu.memory_space<vmem>>, %arg6: memref<4x128xf32, #tpu.memory_space<vmem>>) attributes {dimension_semantics = [#tpu.dimension_semantics<parallel>], iteration_bounds = array<i64: 1>, scalar_prefetch = 0 : i64, scratch_operands = 0 : i64, tpu.core_type = #tpu.core_type<tc>, window_params = [{transform_indices = @transform_0, window_bounds = array<i64: 128, 8>}, {pipeline_mode = #tpu.pipeline_mode<synchronous>, transform_indices = @transform_1, window_bounds = array<i64: 16, 8>}, {pipeline_mode = #tpu.pipeline_mode<synchronous>, transform_indices = @transform_2, window_bounds = array<i64: 16, 8>}, {pipeline_mode = #tpu.pipeline_mode<synchronous>, transform_indices = @transform_3, window_bounds = array<i64: 4, 8>}, {pipeline_mode = #tpu.pipeline_mode<synchronous>, transform_indices = @transform_4, window_bounds = array<i64: 4, 1>}, {transform_indices = @transform_5, window_bounds = array<i64: 4, 128>}]} {
    %c0 = arith.constant 0 : index
    %c0_0 = arith.constant 0 : index
    %0 = vector.load %arg1[%c0, %c0_0] : memref<128x8xf32, #tpu.memory_space<vmem>>, vector<128x8xf32>
    %1 = tpu.transpose %0, [1, 0] : vector<128x8xf32> -> vector<8x128xf32>
    %cst = arith.constant 3.14159274 : f32
    %2 = vector.broadcast %cst : f32 to vector<8x128xf32>
    %3 = arith.mulf %1, %2 : vector<8x128xf32>
    %4 = math.cos %3 : vector<8x128xf32>
    %5 = math.sin %3 : vector<8x128xf32>
    %c0_1 = arith.constant 0 : index
    %c0_2 = arith.constant 0 : index
    %6 = vector.load %arg2[%c0_1, %c0_2] : memref<16x8xf32, #tpu.memory_space<vmem>>, vector<16x8xf32>
    %cst_3 = arith.constant dense<0.000000e+00> : vector<16x128xf32>
    %7 = tpu.matmul %6, %4, %cst_3 {dimension_numbers = #tpu.dot_dimension_numbers<[1], [0], [0], [1], [0, 0, 1, 1], [], []>} : vector<16x8xf32>, vector<8x128xf32>, vector<16x128xf32> -> vector<16x128xf32>
    %c0_4 = arith.constant 0 : index
    %c0_5 = arith.constant 0 : index
    %8 = vector.load %arg3[%c0_4, %c0_5] : memref<16x8xf32, #tpu.memory_space<vmem>>, vector<16x8xf32>
    %cst_6 = arith.constant dense<0.000000e+00> : vector<16x128xf32>
    %9 = tpu.matmul %8, %5, %cst_6 {dimension_numbers = #tpu.dot_dimension_numbers<[1], [0], [0], [1], [0, 0, 1, 1], [], []>} : vector<16x8xf32>, vector<8x128xf32>, vector<16x128xf32> -> vector<16x128xf32>
    %10 = arith.addf %7, %9 : vector<16x128xf32>
    %11 = vector.extract_strided_slice %10 {offsets = [0, 0], sizes = [8, 128], strides = [1, 1]} : vector<16x128xf32> to vector<8x128xf32>
    %12 = vector.extract_strided_slice %10 {offsets = [0, 0], sizes = [8, 128], strides = [1, 1]} : vector<16x128xf32> to vector<8x128xf32>
    %13 = arith.mulf %11, %12 : vector<8x128xf32>
    %14 = vector.extract_strided_slice %10 {offsets = [8, 0], sizes = [8, 128], strides = [1, 1]} : vector<16x128xf32> to vector<8x128xf32>
    %15 = vector.extract_strided_slice %10 {offsets = [8, 0], sizes = [8, 128], strides = [1, 1]} : vector<16x128xf32> to vector<8x128xf32>
    %16 = arith.mulf %14, %15 : vector<8x128xf32>
    %17 = arith.addf %13, %16 : vector<8x128xf32>
    %c0_7 = arith.constant 0 : index
    %c0_8 = arith.constant 0 : index
    %18 = vector.load %arg4[%c0_7, %c0_8] : memref<4x8xf32, #tpu.memory_space<vmem>>, vector<4x8xf32>
    %cst_9 = arith.constant dense<0.000000e+00> : vector<4x128xf32>
    %19 = tpu.matmul %18, %17, %cst_9 {dimension_numbers = #tpu.dot_dimension_numbers<[1], [0], [0], [1], [0, 0, 1, 1], [], []>} : vector<4x8xf32>, vector<8x128xf32>, vector<4x128xf32> -> vector<4x128xf32>
    %c0_10 = arith.constant 0 : index
    %c0_11 = arith.constant 0 : index
    %20 = vector.load %arg5[%c0_10, %c0_11] : memref<4x1xf32, #tpu.memory_space<vmem>>, vector<4x1xf32>
    %21 = vector.broadcast %20 : vector<4x1xf32> to vector<4x128xf32>
    %22 = arith.addf %19, %21 : vector<4x128xf32>
    %c0_12 = arith.constant 0 : index
    %c0_13 = arith.constant 0 : index
    %23 = vector.load %arg6[%c0_12, %c0_13] : memref<4x128xf32, #tpu.memory_space<vmem>>, vector<4x128xf32>
    tpu.vector_store %arg6[%c0_12, %c0_13], %22 {strides = array<i32>} : memref<4x128xf32, #tpu.memory_space<vmem>>, vector<4x128xf32>,
    return
  }
  func.func @transform_0(%arg0: i32) -> (i32, i32) {
    %c0_i32 = arith.constant 0 : i32
    %c0_i32_0 = arith.constant 0 : i32
    return %arg0, %c0_i32 : i32, i32
  }
  func.func @transform_1(%arg0: i32) -> (i32, i32) {
    %c0_i32 = arith.constant 0 : i32
    %c0_i32_0 = arith.constant 0 : i32
    %c0_i32_1 = arith.constant 0 : i32
    return %c0_i32, %c0_i32_0 : i32, i32
  }
  func.func @transform_2(%arg0: i32) -> (i32, i32) {
    %c0_i32 = arith.constant 0 : i32
    %c0_i32_0 = arith.constant 0 : i32
    %c0_i32_1 = arith.constant 0 : i32
    return %c0_i32, %c0_i32_0 : i32, i32
  }
  func.func @transform_3(%arg0: i32) -> (i32, i32) {
    %c0_i32 = arith.constant 0 : i32
    %c0_i32_0 = arith.constant 0 : i32
    %c0_i32_1 = arith.constant 0 : i32
    return %c0_i32, %c0_i32_0 : i32, i32
  }
  func.func @transform_4(%arg0: i32) -> (i32, i32) {
    %c0_i32 = arith.constant 0 : i32
    %c0_i32_0 = arith.constant 0 : i32
    %c0_i32_1 = arith.constant 0 : i32
    return %c0_i32, %c0_i32_0 : i32, i32
  }
  func.func @transform_5(%arg0: i32) -> (i32, i32) {
    %c0_i32 = arith.constant 0 : i32
    %c0_i32_0 = arith.constant 0 : i32
    return %c0_i32, %arg0 : i32, i32
  }
}

</mosaic_0001>

<llo_original>
// kernel: custom-call.5
$region0: #{custom-call.5}
  %s0 = inlined_call_operand.hbm [shape: c64[8,8], index: 0, kind: input, shape index: {}]
  %s1 = inlined_call_operand.vmem [shape: f32[8,8], index: 1, kind: output, shape index: {}]
  %s2 = scalar_lea.hbm %s0, 8
  $region1: #{custom-call.5} parent=0
    #allocation0 [shape = 's32[1]{0}', space=sflag, size = 0x4, scoped, tag = 'scoped memory for custom-call.5']
    %3 = vsyncpa [#allocation0], 0
    %s5 = sshll.u32 %s2, 4
    %s6 = int_to_ptr.hbm [resolvable:$true] %s5
    %s7 = sshll.u32 %s1, 4
    %s8 = int_to_ptr.vmem [resolvable:$true] %s7
    %10 = dma.hbm_to_vmem [thread:$0]  %s6, 128, %s8, [#allocation0]
    %12 = dma.done [#allocation0], 128
    %13 = vsyncpa [#allocation0], 1

// kernel: custom-call.4
$region0: #{custom-call.4}
  %s0 = inlined_call_operand.hbm [shape: c64[8,8], index: 0, kind: input, shape index: {}]
  %s1 = inlined_call_operand.vmem [shape: f32[8,8], index: 1, kind: output, shape index: {}]
  $region1: #{custom-call.4} parent=0
    #allocation0 [shape = 's32[1]{0}', space=sflag, size = 0x4, scoped, tag = 'scoped memory for custom-call.4']
    %2 = vsyncpa [#allocation0], 0
    %s4 = sshll.u32 %s0, 4
    %s5 = int_to_ptr.hbm [resolvable:$true] %s4
    %s6 = sshll.u32 %s1, 4
    %s7 = int_to_ptr.vmem [resolvable:$true] %s6
    %9 = dma.hbm_to_vmem [thread:$0]  %s5, 128, %s7, [#allocation0]
    %11 = dma.done [#allocation0], 128
    %12 = vsyncpa [#allocation0], 1

// kernel: quantum_layer_forward.1
$region0: #{quantum_layer_forward.1}
  #allocation0 [shape = 'u32[]', space=smem, size = 0x4, offset = 0x4, fixed_abs, tag = 'smem constant byte address 0x4 - core index']
  #allocation1 [shape = 'u32[72,128]{1,0:T(1,128)}', space=vmem, size = 0x9000, scoped, tag = 'internal scratch']
  %s0 = inlined_call_operand.vmem [shape: f32[128,8], index: 0, kind: input, shape index: {}]
  %s1 = inlined_call_operand.vmem [shape: f32[16,8], index: 1, kind: input, shape index: {}]
  %s2 = inlined_call_operand.vmem [shape: f32[16,8], index: 2, kind: input, shape index: {}]
  %s3 = inlined_call_operand.vmem [shape: f32[4,8], index: 3, kind: input, shape index: {}]
  %s4 = inlined_call_operand.vmem [shape: f32[4,1], index: 4, kind: input, shape index: {}]
  %s5 = inlined_call_operand.vmem [shape: f32[4,128], index: 5, kind: output, shape index: {}]
  %s6 = sld [smem:[#allocation0]]
  $region30: #{quantum_layer_forward.1} parent=0
    _
  %s8 = ssub.s32 1, %s6
  %s9 = scalar_select 0, %s8, %s6
  // Predicated region
  $region2: #{quantum_layer_forward.1} parent=0 // pred_check
    _
  $region3: #{quantum_layer_forward.1} parent=0 // pred_check_branch
    %11 = sbr.rel (0) target = $region5
  $region4: #{quantum_layer_forward.1} parent=0 // pred_region
    _
  $region5: #{quantum_layer_forward.1} parent=0 // pred_fallthru
    _
  // Predicated region
  $region6: #{quantum_layer_forward.1} parent=0 // pred_check
    _
  $region7: #{quantum_layer_forward.1} parent=0 // pred_check_branch
    %13 = sbr.rel (0) target = $region9
  $region8: #{quantum_layer_forward.1} parent=0 // pred_region
    _
  $region9: #{quantum_layer_forward.1} parent=0 // pred_fallthru
    _
  // Predicated region
  $region10: #{quantum_layer_forward.1} parent=0 // pred_check
    _
  $region11: #{quantum_layer_forward.1} parent=0 // pred_check_branch
    %15 = sbr.rel (0) target = $region13
  $region12: #{quantum_layer_forward.1} parent=0 // pred_region
    _
  $region13: #{quantum_layer_forward.1} parent=0 // pred_fallthru
    _
  // Predicated region
  $region14: #{quantum_layer_forward.1} parent=0 // pred_check
    _
  $region15: #{quantum_layer_forward.1} parent=0 // pred_check_branch
    %17 = sbr.rel (0) target = $region17
  $region16: #{quantum_layer_forward.1} parent=0 // pred_region
    _
  $region17: #{quantum_layer_forward.1} parent=0 // pred_fallthru
    _
  // Predicated region
  $region18: #{quantum_layer_forward.1} parent=0 // pred_check
    _
  $region19: #{quantum_layer_forward.1} parent=0 // pred_check_branch
    %19 = sbr.rel (0) target = $region21
  $region20: #{quantum_layer_forward.1} parent=0 // pred_region
    _
  $region21: #{quantum_layer_forward.1} parent=0 // pred_fallthru
    _
  %v20 = vld [vmem:[%s0] sm:$0xff]
  %v21 = vld [vmem:[%s0 + $0x8] sm:$0xff]
  %v22 = vld [vmem:[%s0 + $0x10] sm:$0xff]
  %v23 = vld [vmem:[%s0 + $0x18] sm:$0xff]
  %v24 = vld [vmem:[%s0 + $0x20] sm:$0xff]
  %v25 = vld [vmem:[%s0 + $0x28] sm:$0xff]
  %v26 = vld [vmem:[%s0 + $0x30] sm:$0xff]
  %v27 = vld [vmem:[%s0 + $0x38] sm:$0xff]
  %v28 = vld [vmem:[%s0 + $0x40] sm:$0xff]
  %v29 = vld [vmem:[%s0 + $0x48] sm:$0xff]
  %v30 = vld [vmem:[%s0 + $0x50] sm:$0xff]
  %v31 = vld [vmem:[%s0 + $0x58] sm:$0xff]
  %v32 = vld [vmem:[%s0 + $0x60] sm:$0xff]
  %v33 = vld [vmem:[%s0 + $0x68] sm:$0xff]
  %v34 = vld [vmem:[%s0 + $0x70] sm:$0xff]
  %v35 = vld [vmem:[%s0 + $0x78] sm:$0xff]
  %36 = vxpose.xlu0.b32.start [1/16] %v20, 128
  %37 = vxpose.xlu0.b32.cont [2/16] %v21, 128
  %38 = vxpose.xlu0.b32.cont [3/16] %v22, 128
  %39 = vxpose.xlu0.b32.cont [4/16] %v23, 128
  %40 = vxpose.xlu0.b32.cont [5/16] %v24, 128
  %41 = vxpose.xlu0.b32.cont [6/16] %v25, 128
  %42 = vxpose.xlu0.b32.cont [7/16] %v26, 128
  %43 = vxpose.xlu0.b32.cont [8/16] %v27, 128
  %44 = vxpose.xlu0.b32.cont [9/16] %v28, 128
  %45 = vxpose.xlu0.b32.cont [10/16] %v29, 128
  %46 = vxpose.xlu0.b32.cont [11/16] %v30, 128
  %47 = vxpose.xlu0.b32.cont [12/16] %v31, 128
  %48 = vxpose.xlu0.b32.cont [13/16] %v32, 128
  %49 = vxpose.xlu0.b32.cont [14/16] %v33, 128
  %50 = vxpose.xlu0.b32.cont [15/16] %v34, 128
  %51 = vxpose.xlu0.b32.end [16/16] %v35, 128
  %v52 = vpop.trf.xlu0
  %v53 = vpop.trf.xlu0
  %v54 = vpop.trf.xlu0
  %v55 = vpop.trf.xlu0
  %v56 = vpop.trf.xlu0
  %v57 = vpop.trf.xlu0
  %v58 = vpop.trf.xlu0
  %v59 = vpop.trf.xlu0
  %v60 = vpop.trf.xlu0
  %v61 = vpop.trf.xlu0
  %v62 = vpop.trf.xlu0
  %v63 = vpop.trf.xlu0
  %v64 = vpop.trf.xlu0
  %v65 = vpop.trf.xlu0
  %v66 = vpop.trf.xlu0
  %v67 = vpop.trf.xlu0
  %v68 = vmul.f32 %v52, 3.1415927
  %v69 = vand.u32 2147483647, %v68
  %vm70 = vcmp.le.f32.partialorder %v69, 0.7853982
  %vm71 = vcmp.lt.s32.totalorder %v68, 0
  %v72 = vand.u32 %v68, 2139095040
  %v73 = vshrl.u32 %v72, 23
  %v74 = vsub.s32 %v73, 127
  %v75 = vand.u32 2147483647, %v68
  %v76 = vand.u32 %v75, 8388607
  %v77 = vor.u32 %v76, 8388608
  %v78 = vsub.s32 0, %v77
  %v79 = vadd.s32 %v74, 1
  %vm80 = vcmp.gt.s32.totalorder %v79, 0
  %v81 = vsel %vm80, %v79, 0
  %v82 = vshrl.u32 %v81, 5
  %v83 = vand.u32 %v81, 31
  %v84 = vsub.s32 32, %v83
  %v85 = vshrl.u32 683565275, %v84
  %v86 = vshll.u32 683565275, %v83
  %v87 = vshrl.u32 2475754826, %v84
  %v88 = vor.u32 %v86, %v87
  %v89 = vshll.u32 2475754826, %v83
  %v90 = vshrl.u32 2131351028, %v84
  %v91 = vor.u32 %v89, %v90
  %v92 = vshll.u32 2131351028, %v83
  %v93 = vshrl.u32 2102212464, %v84
  %v94 = vor.u32 %v92, %v93
  %v95 = vshll.u32 2102212464, %v83
  %v96 = vshrl.u32 920167782, %v84
  %v97 = vor.u32 %v95, %v96
  %v98 = vshll.u32 920167782, %v83
  %v99 = vshrl.u32 1326507024, %v84
  %v100 = vor.u32 %v98, %v99
  %vm101 = vcmp.lt.s32.totalorder %v82, 1
  %vm102 = vcmp.lt.s32.totalorder %v82, 2
  %vm103 = vcmp.lt.s32.totalorder %v82, 3
  %vm104 = vcmp.lt.s32.totalorder %v82, 4
  %v105 = vsel %vm101, %v85, %v88
  %v106 = vsel %vm104, %v94, 2102212464
  %v107 = vsel %vm103, %v91, %v106
  %v108 = vsel %vm102, %v105, %v107
  %v109 = vsel %vm101, %v88, %v91
  %v110 = vsel %vm104, %v97, 920167782
  %v111 = vsel %vm103, %v94, %v110
  %v112 = vsel %vm102, %v109, %v111
  %v113 = vsel %vm101, %v91, %v94
  %v114 = vsel %vm104, %v100, 1326507024
  %v115 = vsel %vm103, %v97, %v114
  %v116 = vsel %vm102, %v113, %v115
  %v117 = vshll.u32 %v77, 8
  %v118 = vand.u32 %v117, 65535
  %v119 = vshrl.u32 %v117, 16
  %v120 = vand.u32 %v116, 65535
  %v121 = vshrl.u32 %v116, 16
  %v122 = vmul.u32 %v118, %v120
  %v123 = vmul.u32 %v118, %v121
  %v124 = vmul.u32 %v119, %v120
  %v125 = vmul.u32 %v119, %v121
  %v126 = vshll.u32 %v123, 16
  %v127 = vshrl.u32 %v123, 16
  %v128 = vshll.u32 %v124, 16
  %v129 = vshrl.u32 %v124, 16
  %vm130 = vc.u32 %v122, %v126
  %v131 = vsel %vm130, 1, 0
  %v132 = vadd.s32 %v122, %v126
  %v133 = vadd.s32 %v125, %v131
  %vm134 = vc.u32 %v132, %v128
  %v135 = vsel %vm134, 1, 0
  %v136 = vadd.s32 %v132, %v128
  %v137 = vadd.s32 %v133, %v135
  %v138 = vadd.s32 %v137, %v127
  %v139 = vadd.s32 %v138, %v129
  %v140 = vand.u32 %v117, 65535
  %v141 = vshrl.u32 %v117, 16
  %v142 = vand.u32 %v112, 65535
  %v143 = vshrl.u32 %v112, 16
  %v144 = vmul.u32 %v140, %v142
  %v145 = vmul.u32 %v140, %v143
  %v146 = vmul.u32 %v141, %v142
  %v147 = vmul.u32 %v141, %v143
  %v148 = vshll.u32 %v145, 16
  %v149 = vshrl.u32 %v145, 16
  %v150 = vshll.u32 %v146, 16
  %v151 = vshrl.u32 %v146, 16
  %vm152 = vc.u32 %v144, %v148
  %v153 = vsel %vm152, 1, 0
  %v154 = vadd.s32 %v144, %v148
  %v155 = vadd.s32 %v147, %v153
  %vm156 = vc.u32 %v154, %v150
  %v157 = vsel %vm156, 1, 0
  %v158 = vadd.s32 %v154, %v150
  %v159 = vadd.s32 %v155, %v157
  %v160 = vadd.s32 %v159, %v149
  %v161 = vadd.s32 %v160, %v151
  %v162 = vmul.u32 %v117, %v108
  %v163 = vadd.s32 %v139, %v158
  %vm164 = vc.u32 %v139, %v158
  %v165 = vadd.s32 %v161, 1
  %v166 = vsel %vm164, %v165, %v161
  %v167 = vadd.s32 %v162, %v166
  %v168 = vadd.s32 %v167, 536870912
  %v169 = vshrl.u32 %v168, 30
  %v170 = vshll.u32 %v169, 30
  %v171 = vsub.s32 %v167, %v170
  %vm172 = vcmp.lt.s32.totalorder %v171, 0
  %v173 = vsub.s32 0, %v171
  %v174 = vsel %vm172, %v173, %v171
  %v175 = vclz %v174
  %v176 = vsub.s32 %v175, 2
  %vm177 = vcmp.gt.s32.totalorder 0, %v176
  %v178 = vsel %vm177, 0, %v176
  %v179 = vsub.s32 32, %v178
  %v180 = vshll.u32 %v171, %v178
  %v181 = vshrl.u32 %v163, %v179
  %v182 = vor.u32 %v180, %v181
  %v183 = vsub.s32 4294967266, %v178
  %v184 = vadd.s32 %v183, 127
  %v185 = vshll.u32 %v184, 23
  %v186 = vor.u32 4788187, %v185
  %v187 = vand.u32 2147483647, %v186
  %v189 = vcvt.s32.f32 %v182
  %v190 = vmul.f32 %v189, %v187
  %v191 = vxor.u32 %v190, 2147483648
  %v192 = vsel %vm71, %v191, %v190
  %v193 = vsub.s32 4, %v169
  %v194 = vsel %vm71, %v193, %v169
  %v195 = vsel %vm70, %v68, %v192
  %v196 = vsel %vm70, 0, %v194
  %v197 = vmul.f32 %v195, %v195
  %v198 = vmul.f32 %v197, -0.001358992
  %v199 = vadd.f32 %v198, 0.041655596
  %v200 = vmul.f32 %v197, %v199
  %v201 = vadd.f32 %v200, -0.4999988
  %v202 = vmul.f32 %v197, %v201
  %v203 = vadd.f32 1.0, %v202
  %v204 = vmul.f32 %v195, %v195
  %v205 = vmul.f32 %v204, -0.00019511016
  %v206 = vadd.f32 %v205, 0.008332121
  %v207 = vmul.f32 %v204, %v206
  %v208 = vadd.f32 %v207, -0.16666654
  %v209 = vmul.f32 %v204, %v208
  %v210 = vadd.f32 %v209, 1.0
  %v211 = vmul.f32 %v210, %v195
  %vm212 = vweird.f32 %v68
  %v213 = vand.u32 %v196, 3
  %vm214 = vcmp.lt.s32.totalorder %v213, 2
  %vm215 = vcmp.eq.s32.totalorder %v213, 0
  %v216 = vxor.u32 %v211, 2147483648
  %v217 = vsel %vm215, %v203, %v216
  %vm218 = vcmp.eq.s32.totalorder %v213, 2
  %v219 = vxor.u32 %v203, 2147483648
  %v220 = vsel %vm218, %v219, %v211
  %v221 = vsel %vm214, %v217, %v220
  %v222 = vsel %vm212, nan, %v221
  %v223 = vand.u32 2147483647, %v68
  %vm224 = vcmp.le.f32.partialorder %v223, 0.7853982
  %vm225 = vcmp.lt.s32.totalorder %v68, 0
  %v226 = vand.u32 %v68, 2139095040
  %v227 = vshrl.u32 %v226, 23
  %v228 = vsub.s32 %v227, 127
  %v229 = vand.u32 2147483647, %v68
  %v230 = vand.u32 %v229, 8388607
  %v231 = vor.u32 %v230, 8388608
  %v232 = vsub.s32 0, %v231
  %v233 = vadd.s32 %v228, 1
  %vm234 = vcmp.gt.s32.totalorder %v233, 0
  %v235 = vsel %vm234, %v233, 0
  %v236 = vshrl.u32 %v235, 5
  %v237 = vand.u32 %v235, 31
  %v238 = vsub.s32 32, %v237
  %v239 = vshrl.u32 683565275, %v238
  %v240 = vshll.u32 683565275, %v237
  %v241 = vshrl.u32 2475754826, %v238
  %v242 = vor.u32 %v240, %v241
  %v243 = vshll.u32 2475754826, %v237
  %v244 = vshrl.u32 2131351028, %v238
  %v245 = vor.u32 %v243, %v244
  %v246 = vshll.u32 2131351028, %v237
  %v247 = vshrl.u32 2102212464, %v238
  %v248 = vor.u32 %v246, %v247
  %v249 = vshll.u32 2102212464, %v237
  %v250 = vshrl.u32 920167782, %v238
  %v251 = vor.u32 %v249, %v250
  %v252 = vshll.u32 920167782, %v237
  %v253 = vshrl.u32 1326507024, %v238
  %v254 = vor.u32 %v252, %v253
  %vm255 = vcmp.lt.s32.totalorder %v236, 1
  %vm256 = vcmp.lt.s32.totalorder %v236, 2
  %vm257 = vcmp.lt.s32.totalorder %v236, 3
  %vm258 = vcmp.lt.s32.totalorder %v236, 4
  %v259 = vsel %vm255, %v239, %v242
  %v260 = vsel %vm258, %v248, 2102212464
  %v261 = vsel %vm257, %v245, %v260
  %v262 = vsel %vm256, %v259, %v261
  %v263 = vsel %vm255, %v242, %v245
  %v264 = vsel %vm258, %v251, 920167782
  %v265 = vsel %vm257, %v248, %v264
  %v266 = vsel %vm256, %v263, %v265
  %v267 = vsel %vm255, %v245, %v248
  %v268 = vsel %vm258, %v254, 1326507024
  %v269 = vsel %vm257, %v251, %v268
  %v270 = vsel %vm256, %v267, %v269
  %v271 = vshll.u32 %v231, 8
  %v272 = vand.u32 %v271, 65535
  %v273 = vshrl.u32 %v271, 16
  %v274 = vand.u32 %v270, 65535
  %v275 = vshrl.u32 %v270, 16
  %v276 = vmul.u32 %v272, %v274
  %v277 = vmul.u32 %v272, %v275
  %v278 = vmul.u32 %v273, %v274
  %v279 = vmul.u32 %v273, %v275
  %v280 = vshll.u32 %v277, 16
  %v281 = vshrl.u32 %v277, 16
  %v282 = vshll.u32 %v278, 16
  %v283 = vshrl.u32 %v278, 16
  %vm284 = vc.u32 %v276, %v280
  %v285 = vsel %vm284, 1, 0
  %v286 = vadd.s32 %v276, %v280
  %v287 = vadd.s32 %v279, %v285
  %vm288 = vc.u32 %v286, %v282
  %v289 = vsel %vm288, 1, 0
  %v290 = vadd.s32 %v286, %v282
  %v291 = vadd.s32 %v287, %v289
  %v292 = vadd.s32 %v291, %v281
  %v293 = vadd.s32 %v292, %v283
  %v294 = vand.u32 %v271, 65535
  %v295 = vshrl.u32 %v271, 16
  %v296 = vand.u32 %v266, 65535
  %v297 = vshrl.u32 %v266, 16
  %v298 = vmul.u32 %v294, %v296
  %v299 = vmul.u32 %v294, %v297
  %v300 = vmul.u32 %v295, %v296
  %v301 = vmul.u32 %v295, %v297
  %v302 = vshll.u32 %v299, 16
  %v303 = vshrl.u32 %v299, 16
  %v304 = vshll.u32 %v300, 16
  %v305 = vshrl.u32 %v300, 16
  %vm306 = vc.u32 %v298, %v302
  %v307 = vsel %vm306, 1, 0
  %v308 = vadd.s32 %v298, %v302
  %v309 = vadd.s32 %v301, %v307
  %vm310 = vc.u32 %v308, %v304
  %v311 = vsel %vm310, 1, 0
  %v312 = vadd.s32 %v308, %v304
  %v313 = vadd.s32 %v309, %v311
  %v314 = vadd.s32 %v313, %v303
  %v315 = vadd.s32 %v314, %v305
  %v316 = vmul.u32 %v271, %v262
  %v317 = vadd.s32 %v293, %v312
  %vm318 = vc.u32 %v293, %v312
  %v319 = vadd.s32 %v315, 1
  %v320 = vsel %vm318, %v319, %v315
  %v321 = vadd.s32 %v316, %v320
  %v322 = vadd.s32 %v321, 536870912
  %v323 = vshrl.u32 %v322, 30
  %v324 = vshll.u32 %v323, 30
  %v325 = vsub.s32 %v321, %v324
  %vm326 = vcmp.lt.s32.totalorder %v325, 0
  %v327 = vsub.s32 0, %v325
  %v328 = vsel %vm326, %v327, %v325
  %v329 = vclz %v328
  %v330 = vsub.s32 %v329, 2
  %vm331 = vcmp.gt.s32.totalorder 0, %v330
  %v332 = vsel %vm331, 0, %v330
  %v333 = vsub.s32 32, %v332
  %v334 = vshll.u32 %v325, %v332
  %v335 = vshrl.u32 %v317, %v333
  %v336 = vor.u32 %v334, %v335
  %v337 = vsub.s32 4294967266, %v332
  %v338 = vadd.s32 %v337, 127
  %v339 = vshll.u32 %v338, 23
  %v340 = vor.u32 4788187, %v339
  %v341 = vand.u32 2147483647, %v340
  %v343 = vcvt.s32.f32 %v336
  %v344 = vmul.f32 %v343, %v341
  %v345 = vxor.u32 %v344, 2147483648
  %v346 = vsel %vm225, %v345, %v344
  %v347 = vsub.s32 4, %v323
  %v348 = vsel %vm225, %v347, %v323
  %v349 = vsel %vm224, %v68, %v346
  %v350 = vsel %vm224, 0, %v348
  %v351 = vmul.f32 %v349, %v349
  %v352 = vmul.f32 %v351, -0.001358992
  %v353 = vadd.f32 %v352, 0.041655596
  %v354 = vmul.f32 %v351, %v353
  %v355 = vadd.f32 %v354, -0.4999988
  %v356 = vmul.f32 %v351, %v355
  %v357 = vadd.f32 1.0, %v356
  %v358 = vmul.f32 %v349, %v349
  %v359 = vmul.f32 %v358, -0.00019511016
  %v360 = vadd.f32 %v359, 0.008332121
  %v361 = vmul.f32 %v358, %v360
  %v362 = vadd.f32 %v361, -0.16666654
  %v363 = vmul.f32 %v358, %v362
  %v364 = vadd.f32 %v363, 1.0
  %v365 = vmul.f32 %v364, %v349
  %vm366 = vweird.f32 %v68
  %v367 = vadd.s32 %v350, 3
  %v368 = vand.u32 %v367, 3
  %vm369 = vcmp.lt.s32.totalorder %v368, 2
  %vm370 = vcmp.eq.s32.totalorder %v368, 0
  %v371 = vxor.u32 %v365, 2147483648
  %v372 = vsel %vm370, %v357, %v371
  %vm373 = vcmp.eq.s32.totalorder %v368, 2
  %v374 = vxor.u32 %v357, 2147483648
  %v375 = vsel %vm373, %v374, %v365
  %v376 = vsel %vm369, %v372, %v375
  %v377 = vsel %vm366, nan, %v376
  %v378 = vld [vmem:[%s1] sm:$0xff]
  %v379 = vld [vmem:[%s1 + $0x8] sm:$0xff]
  %v380 = vld [vmem:[%s2] sm:$0xff]
  %v381 = vld [vmem:[%s2 + $0x8] sm:$0xff]
  %vm382 = vcmask 64512
  %v384 = vsel %vm382, %v380, 0
  %v387 = vsel %vm382, %v381, 0
  %389 = vmatpush.msra.mxu0 0.0
  %390 = vmatpush.msra.mxu0 0.0
  %391 = vmatpush.msra.mxu0 0.0
  %392 = vmatpush.msra.mxu0 0.0
  %393 = vmatpush.msra.mxu0 0.0
  %394 = vmatpush.msra.mxu0 0.0
  %395 = vmatpush.msra.mxu0 0.0
  %396 = vmatpush.msra.mxu0 0.0
  %397 = vmatpush.msra.mxu0 0.0
  %398 = vmatpush.msra.mxu0 0.0
  %399 = vmatpush.msra.mxu0 0.0
  %400 = vmatpush.msra.mxu0 0.0
  %401 = vmatpush.msra.mxu0 0.0
  %402 = vmatpush.msra.mxu0 0.0
  %403 = vmatpush.msra.mxu0 0.0
  %404 = vmatpush.msra.mxu0 %v377
  %405 = vmatmul.f32.gmra.mxu0 %v384
  %v406 = vpop.f32.mrf.mxu0
  %v407 = vadd.f32 0.0, %v406
  %408 = vmatmul.f32.gmra.mxu0 %v387
  %v409 = vpop.f32.mrf.mxu0
  %v410 = vadd.f32 0.0, %v409
  %411 = vdwg.mxu0
  %v413 = vsel %vm382, %v378, 0
  %v416 = vsel %vm382, %v379, 0
  %418 = vmatpush.msra.mxu0 0.0
  %419 = vmatpush.msra.mxu0 0.0
  %420 = vmatpush.msra.mxu0 0.0
  %421 = vmatpush.msra.mxu0 0.0
  %422 = vmatpush.msra.mxu0 0.0
  %423 = vmatpush.msra.mxu0 0.0
  %424 = vmatpush.msra.mxu0 0.0
  %425 = vmatpush.msra.mxu0 0.0
  %426 = vmatpush.msra.mxu0 0.0
  %427 = vmatpush.msra.mxu0 0.0
  %428 = vmatpush.msra.mxu0 0.0
  %429 = vmatpush.msra.mxu0 0.0
  %430 = vmatpush.msra.mxu0 0.0
  %431 = vmatpush.msra.mxu0 0.0
  %432 = vmatpush.msra.mxu0 0.0
  %433 = vmatpush.msra.mxu0 %v222
  %434 = vmatmul.f32.gmra.mxu0 %v413
  %v435 = vpop.f32.mrf.mxu0
  %v436 = vadd.f32 %v407, %v435
  %437 = vmatmul.f32.gmra.mxu0 %v416
  %v438 = vpop.f32.mrf.mxu0
  %v439 = vadd.f32 %v410, %v438
  %440 = vdwg.mxu0
  %v441 = vmul.f32 %v436, %v436
  %v442 = vmul.f32 %v439, %v439
  %v443 = vadd.f32 %v441, %v442
  %v444 = vld [vmem:[%s3] sm:$0xf]
  %v445 = vld [vmem:[%s4] sm:$0xf]
  %447 = vset.pattern.permute.xlu0 0
  %448 = vperm.xlu0 %447, %v445
  %v449 = vpop.permute.xlu0 %448
  %v452 = vsel %vm382, %v444, 0
  %454 = vmatpush.msra.mxu0 0.0
  %455 = vmatpush.msra.mxu0 0.0
  %456 = vmatpush.msra.mxu0 0.0
  %457 = vmatpush.msra.mxu0 0.0
  %458 = vmatpush.msra.mxu0 0.0
  %459 = vmatpush.msra.mxu0 0.0
  %460 = vmatpush.msra.mxu0 0.0
  %461 = vmatpush.msra.mxu0 0.0
  %462 = vmatpush.msra.mxu0 0.0
  %463 = vmatpush.msra.mxu0 0.0
  %464 = vmatpush.msra.mxu0 0.0
  %465 = vmatpush.msra.mxu0 0.0
  %466 = vmatpush.msra.mxu0 0.0
  %467 = vmatpush.msra.mxu0 0.0
  %468 = vmatpush.msra.mxu0 0.0
  %469 = vmatpush.msra.mxu0 %v443
  %470 = vmatmul.f32.gmra.mxu0 %v452
  %v471 = vpop.f32.mrf.mxu0
  %v472 = vadd.f32 %v449, %v471
  %473 = vdwg.mxu0
  %474 = vst [vmem:[%s5] sm:$0xf] %v472
  // Predicated region
  $region22: #{quantum_layer_forward.1} parent=0 // pred_check
    _
  $region23: #{quantum_layer_forward.1} parent=0 // pred_check_branch
    %476 = sbr.rel (0) target = $region25
  $region24: #{quantum_layer_forward.1} parent=0 // pred_region
    _
  $region25: #{quantum_layer_forward.1} parent=0 // pred_fallthru
    _
  // Predicated region
  $region26: #{quantum_layer_forward.1} parent=0 // pred_check
    _
  $region27: #{quantum_layer_forward.1} parent=0 // pred_check_branch
    %478 = sbr.rel (0) target = $region29
  $region28: #{quantum_layer_forward.1} parent=0 // pred_region
    _
  $region29: #{quantum_layer_forward.1} parent=0 // pred_fallthru
    _

</llo_original>
